<compile_context>
chip_gen: v7x
topology: tpu7x:2x2x1
jax: 0.10.0
libtpu: 0.0.40
codegen_flags: <defaults>
</compile_context>

<pallas_src>
import functools

import jax
import jax.numpy as jnp
from jax import lax
from jax.experimental import pallas as pl
from jax.experimental.pallas import tpu as pltpu


def _round_up(x: int, m: int) -> int:
    return ((x + m - 1) // m) * m


def _make_kernel(hw: int, hw_pad: int):
    need_mask = hw_pad != hw

    def kernel(temp_ref, x_ref, coords_ref, o_ref):
        # temp_ref:   SMEM (1,)               scalar temperature
        # x_ref:      VMEM (TILE_BN, HW_pad)  heatmap rows (lanes >= hw are uninitialized)
        # coords_ref: VMEM (HW_pad, 8)        cols: [pos_x, pos_y, 1, 0, ...]
        # o_ref:      VMEM (TILE_BN, 8)       cols 0/1 hold the (x, y) expectation
        t = temp_ref[0]
        x = x_ref[...].astype(jnp.float32) * t
        if need_mask:
            # Mask pad lanes AFTER the temperature multiply: robust for temp <= 0 and for
            # whatever garbage sits in the block's out-of-bounds lanes.
            lane = lax.broadcasted_iota(jnp.int32, x.shape, 1)
            x = jnp.where(lane < hw, x, -jnp.inf)

        # numerically stable softmax numerator over the spatial (lane) axis
        m = jnp.max(x, axis=-1, keepdims=True)
        e = jnp.exp(x - m)  # masked lanes: exp(-inf) == 0

        # one MXU matmul per tile: cols -> [sum(e*pos_x), sum(e*pos_y), sum(e), 0, ...]
        s = jnp.dot(e, coords_ref[...], preferred_element_type=jnp.float32)

        denom = s[:, 2:3]
        inv = pl.reciprocal(denom, approx=True)
        inv = inv * (2.0 - denom * inv)  # one Newton step -> full f32 precision

        o_ref[...] = (s * inv).astype(o_ref.dtype)

    return kernel


@functools.partial(jax.jit, static_argnames=("normalized_coordinates",))
def spatial_soft_argmax2d(x, temperature=1.0, normalized_coordinates=True):
    """JAX/Pallas equivalent of kornia.spatial_soft_argmax2d.

    Args:
      x: (B, N, H, W) heatmap.
      temperature: scalar factor applied to the heatmap before softmax.
      normalized_coordinates: if True, coordinates in [-1, 1]; else pixel indices.

    Returns:
      (B, N, 2) expected (x, y) coordinates, dtype of x.
    """
    B, N, H, W = x.shape
    BN, HW = B * N, H * W
    HW_pad = max(128, _round_up(HW, 128))

    itemsize = jnp.dtype(x.dtype).itemsize
    sub = {4: 8, 2: 16, 1: 32}.get(itemsize, 8)  # dtype-aware sublane multiple

    # --- tile sizing: ~4 MiB per pipelined input buffer (roofline-friendly on v5e/v6e/v7x)
    bytes_per_row = HW_pad * itemsize
    per_buf_budget = 4 * 1024 * 1024
    tile_bn = max(sub, (per_buf_budget // bytes_per_row) // sub * sub)
    tile_bn = min(tile_bn, _round_up(BN, sub))  # never larger than the whole problem
    if BN > sub:
        # keep >= 2 (ideally >= 4) grid steps so dimension_semantics=("parallel",) can
        # shard the row-tile axis across v7x's two TensorCores
        tile_bn = min(tile_bn, _round_up(pl.cdiv(BN, 4), sub))
    tile_bn = max(tile_bn, sub)
    grid = (pl.cdiv(BN, tile_bn),)

    # --- explicit VMEM budget from the actual (double-buffered) buffers
    in_bytes = 2 * tile_bn * bytes_per_row
    coord_bytes = 2 * HW_pad * 128 * 4   # (HW_pad, 8) f32 lane-pads to 128 lanes
    out_bytes = 2 * tile_bn * 128 * 4    # (tile_bn, 8) f32 lane-pads to 128 lanes
    vmem_limit = in_bytes + coord_bytes + out_bytes + (2 << 20)  # headroom for internals
    vmem_limit = int(min(max(vmem_limit, 16 << 20), 100 << 20))

    x_flat = x.reshape(BN, HW)  # no padding copies: the kernel masks pad lanes itself

    # --- tiny (HW_pad, 8) coordinate matrix: cols = [pos_x, pos_y, 1, 0...]; pad rows = 0
    if normalized_coordinates:
        xs = jnp.linspace(-1.0, 1.0, W, dtype=jnp.float32)
        ys = jnp.linspace(-1.0, 1.0, H, dtype=jnp.float32)
    else:
        xs = jnp.arange(W, dtype=jnp.float32)
        ys = jnp.arange(H, dtype=jnp.float32)
    pos_x = jnp.tile(xs, (H,))      # x varies fastest in the (H, W) flattening
    pos_y = jnp.repeat(ys, W)
    ones = jnp.ones((HW,), jnp.float32)
    zeros = jnp.zeros((HW,), jnp.float32)
    coords = jnp.stack([pos_x, pos_y, ones, zeros, zeros, zeros, zeros, zeros], axis=-1)
    if HW_pad > HW:
        coords = jnp.concatenate(
            [coords, jnp.zeros((HW_pad - HW, 8), jnp.float32)], axis=0)

    temp = jnp.asarray(temperature, dtype=jnp.float32).reshape((1,))

    out = pl.pallas_call(
        _make_kernel(HW, HW_pad),
        out_shape=jax.ShapeDtypeStruct((BN, 8), jnp.float32),
        grid=grid,
        in_specs=[
            pl.BlockSpec(memory_space=pltpu.MemorySpace.SMEM),    # temperature scalar
            pl.BlockSpec((tile_bn, HW_pad), lambda i: (i, 0)),    # heatmap row tile
            pl.BlockSpec((HW_pad, 8), lambda i: (0, 0)),          # coords (grid-invariant)
        ],
        out_specs=pl.BlockSpec((tile_bn, 8), lambda i: (i, 0)),
        compiler_params=pltpu.CompilerParams(
            dimension_semantics=("parallel",),                    # shard tiles on v7x TCs
            vmem_limit_bytes=vmem_limit,
        ),
    )(temp, x_flat, coords)

    return out[:, :2].reshape(B, N, 2).astype(x.dtype)


def _reference(x, temperature=1.0, normalized_coordinates=True):
    """Pure-JAX reference mirroring kornia's spatial_softmax2d + spatial_expectation2d."""
    B, N, H, W = x.shape
    x_flat = x.reshape(B, N, -1).astype(jnp.float32) * temperature
    p = jax.nn.softmax(x_flat, axis=-1)
    if normalized_coordinates:
        xs = jnp.linspace(-1.0, 1.0, W, dtype=jnp.float32)
        ys = jnp.linspace(-1.0, 1.0, H, dtype=jnp.float32)
    else:
        xs = jnp.arange(W, dtype=jnp.float32)
        ys = jnp.arange(H, dtype=jnp.float32)
    pos_x = jnp.tile(xs, (H,))
    pos_y = jnp.repeat(ys, W)
    ex = jnp.sum(p * pos_x, axis=-1)
    ey = jnp.sum(p * pos_y, axis=-1)
    return jnp.stack([ex, ey], axis=-1).astype(x.dtype)


if __name__ == "__main__":
    key = jax.random.PRNGKey(0)

    # module defaults: temperature = 1.0, normalized_coordinates = True
    B, N, H, W = 2, 4, 16, 16
    x = jax.random.normal(key, (B, N, H, W), dtype=jnp.float32) * 3.0

    out = jax.block_until_ready(spatial_soft_argmax2d(x, 1.0, normalized_coordinates=True))
    ref = _reference(x, 1.0, True)
    assert out.shape == (B, N, 2), out.shape
    assert jnp.allclose(out, ref, atol=1e-5, rtol=1e-5), (out, ref)

    # pixel-coordinate path
    out_px = jax.block_until_ready(
        spatial_soft_argmax2d(x, 1.0, normalized_coordinates=False))
    ref_px = _reference(x, 1.0, False)
    assert jnp.allclose(out_px, ref_px, atol=1e-4, rtol=1e-5), (out_px, ref_px)

    # ragged spatial size (exercises in-kernel lane masking) + non-unit temperature
    x2 = jax.random.normal(jax.random.PRNGKey(1), (2, 3, 13, 11), dtype=jnp.float32) * 2.0
    out2 = jax.block_until_ready(
        spatial_soft_argmax2d(x2, 0.5, normalized_coordinates=True))
    ref2 = _reference(x2, 0.5, True)
    assert jnp.allclose(out2, ref2, atol=1e-5, rtol=1e-5), (out2, ref2)

    # temperature = 0 on a lane-padded shape (previously NaN-prone): uniform softmax
    out3 = jax.block_until_ready(
        spatial_soft_argmax2d(x2, 0.0, normalized_coordinates=True))
    ref3 = _reference(x2, 0.0, True)
    assert jnp.allclose(out3, ref3, atol=1e-5, rtol=1e-5), (out3, ref3)

    # bf16 heatmaps (half the HBM traffic; exercises dtype-aware sublane tiling)
    x4 = (jax.random.normal(jax.random.PRNGKey(2), (2, 4, 16, 16), dtype=jnp.float32) * 3.0
          ).astype(jnp.bfloat16)
    out4 = jax.block_until_ready(
        spatial_soft_argmax2d(x4, 1.0, normalized_coordinates=True))
    ref4 = _reference(x4, 1.0, True)
    assert jnp.allclose(out4.astype(jnp.float32), ref4.astype(jnp.float32),
                        atol=2e-2, rtol=2e-2), (out4, ref4)

    print("KERNEL_OK")
</pallas_src>

<mosaic_0001>
module attributes {stable_mosaic.version = 11 : i64} {
  func.func @kernel(%arg0: i32, %arg1: memref<1xf32, #tpu.memory_space<smem>>, %arg2: memref<8x256xf32, #tpu.memory_space<vmem>>, %arg3: memref<256x8xf32, #tpu.memory_space<vmem>>, %arg4: memref<8x8xf32, #tpu.memory_space<vmem>>) attributes {dimension_semantics = [#tpu.dimension_semantics<parallel>], iteration_bounds = array<i64: 1>, scalar_prefetch = 0 : i64, scratch_operands = 0 : i64, tpu.core_type = #tpu.core_type<tc>, window_params = [{transform_indices = @transform_0, window_bounds = array<i64: 1>}, {transform_indices = @transform_1, window_bounds = array<i64: 8, 256>}, {pipeline_mode = #tpu.pipeline_mode<synchronous>, transform_indices = @transform_2, window_bounds = array<i64: 256, 8>}, {transform_indices = @transform_3, window_bounds = array<i64: 8, 8>}]} {
    %c0 = arith.constant 0 : index
    %0 = memref.load %arg1[%c0] : memref<1xf32, #tpu.memory_space<smem>>
    %c0_0 = arith.constant 0 : index
    %c0_1 = arith.constant 0 : index
    %1 = vector.load %arg2[%c0_0, %c0_1] : memref<8x256xf32, #tpu.memory_space<vmem>>, vector<8x256xf32>
    %2 = vector.broadcast %0 : f32 to vector<8x256xf32>
    %3 = arith.mulf %1, %2 : vector<8x256xf32>
    %cst = arith.constant dense<0xFF800000> : vector<8xf32>
    %4 = vector.multi_reduction <maximumf>, %3, %cst [1] : vector<8x256xf32> to vector<8xf32>
    %5 = vector.shape_cast %4 : vector<8xf32> to vector<8x1xf32>
    %6 = vector.broadcast %5 : vector<8x1xf32> to vector<8x256xf32>
    %7 = arith.subf %3, %6 : vector<8x256xf32>
    %8 = math.exp %7 : vector<8x256xf32>
    %c0_2 = arith.constant 0 : index
    %c0_3 = arith.constant 0 : index
    %9 = vector.load %arg3[%c0_2, %c0_3] : memref<256x8xf32, #tpu.memory_space<vmem>>, vector<256x8xf32>
    %cst_4 = arith.constant dense<0.000000e+00> : vector<8x8xf32>
    %10 = tpu.matmul %8, %9, %cst_4 {dimension_numbers = #tpu.dot_dimension_numbers<[1], [0], [0], [1], [0, 0, 1, 1], [], []>} : vector<8x256xf32>, vector<256x8xf32>, vector<8x8xf32> -> vector<8x8xf32>
    %11 = vector.extract_strided_slice %10 {offsets = [0, 2], sizes = [8, 1], strides = [1, 1]} : vector<8x8xf32> to vector<8x1xf32>
    %12 = tpu.reciprocal %11 {approx = true} : vector<8x1xf32> -> vector<8x1xf32>
    %13 = arith.mulf %11, %12 : vector<8x1xf32>
    %cst_5 = arith.constant 2.000000e+00 : f32
    %14 = vector.broadcast %cst_5 : f32 to vector<8x1xf32>
    %15 = arith.subf %14, %13 : vector<8x1xf32>
    %16 = arith.mulf %12, %15 : vector<8x1xf32>
    %17 = vector.broadcast %16 : vector<8x1xf32> to vector<8x8xf32>
    %18 = arith.mulf %10, %17 : vector<8x8xf32>
    %c0_6 = arith.constant 0 : index
    %c0_7 = arith.constant 0 : index
    %19 = vector.load %arg4[%c0_6, %c0_7] : memref<8x8xf32, #tpu.memory_space<vmem>>, vector<8x8xf32>
    tpu.vector_store %arg4[%c0_6, %c0_7], %18 {strides = array<i32>} : memref<8x8xf32, #tpu.memory_space<vmem>>, vector<8x8xf32>,
    return
  }
  func.func @transform_0(%arg0: i32) -> i32 {
    %c0_i32 = arith.constant 0 : i32
    %c0_i32_0 = arith.constant 0 : i32
    return %c0_i32 : i32
  }
  func.func @transform_1(%arg0: i32) -> (i32, i32) {
    %c0_i32 = arith.constant 0 : i32
    %c0_i32_0 = arith.constant 0 : i32
    return %arg0, %c0_i32 : i32, i32
  }
  func.func @transform_2(%arg0: i32) -> (i32, i32) {
    %c0_i32 = arith.constant 0 : i32
    %c0_i32_0 = arith.constant 0 : i32
    %c0_i32_1 = arith.constant 0 : i32
    return %c0_i32, %c0_i32_0 : i32, i32
  }
  func.func @transform_3(%arg0: i32) -> (i32, i32) {
    %c0_i32 = arith.constant 0 : i32
    %c0_i32_0 = arith.constant 0 : i32
    return %arg0, %c0_i32 : i32, i32
  }
}

</mosaic_0001>

<llo_original>
// kernel: tile.8
$region0: #{tile.8}
  #allocation0 [shape = 's32[1]{0}', space=sflag, size = 0x4, scoped, tag = 'scoped memory for tile.8']
  %s0 = inlined_call_operand.vmem [shape: f32[16], index: 0, kind: input, shape index: {}]
  %s1 = inlined_call_operand.vmem [shape: f32[16,16], index: 1, kind: output, shape index: {}]
  // Predicated region
  $region2: #{tile.8} parent=0 // pred_check
    _
  $region3: #{tile.8} parent=0 // pred_check_branch
    %3 = sbr.rel (0) target = $region5
  $region4: #{tile.8} parent=0 // pred_region
    _
  $region5: #{tile.8} parent=0 // pred_fallthru
    _
  %v4 = vld [vmem:[%s0] ss:$0 sm:$0xff]
  %5 = vst [vmem:[%s1] sm:$0xff] %v4
  %s6 = scalar_lea.vmem %s1, 8
  %7 = vst [vmem:[%s6] sm:$0xff] %v4

// kernel: spatial_soft_argmax2d.1
$region0: #{spatial_soft_argmax2d.1}
  #allocation0 [shape = 'u32[]', space=smem, size = 0x4, offset = 0x4, fixed_abs, tag = 'smem constant byte address 0x4 - core index']
  #allocation1 [shape = 'u32[144,128]{1,0:T(1,128)}', space=vmem, size = 0x12000, scoped, tag = 'internal scratch']
  #allocation2 [shape = 'f32[1]{0:T(128)S(6)}', space=smem, size = 0x200, scoped, tag = 'scoped memory for spatial_soft_argmax2d.1']
  %s0 = inlined_call_operand.<no memory space> [shape: f32[1], index: 0, kind: input, shape index: {}]
  %s1 = inlined_call_operand.vmem [shape: f32[8,256], index: 1, kind: input, shape index: {}]
  %s2 = inlined_call_operand.vmem [shape: f32[256,8], index: 2, kind: input, shape index: {}]
  %s3 = inlined_call_operand.vmem [shape: f32[8,8], index: 3, kind: output, shape index: {}]
  %s4 = sld [smem:[#allocation0]]
  $region22: #{spatial_soft_argmax2d.1} parent=0
    _
  %s6 = ssub.s32 1, %s4
  %s7 = scalar_select 0, %s6, %s4
  %8 = sst [smem:[#allocation2]] %s0
  // Predicated region
  $region2: #{spatial_soft_argmax2d.1} parent=0 // pred_check
    _
  $region3: #{spatial_soft_argmax2d.1} parent=0 // pred_check_branch
    %10 = sbr.rel (0) target = $region5
  $region4: #{spatial_soft_argmax2d.1} parent=0 // pred_region
    _
  $region5: #{spatial_soft_argmax2d.1} parent=0 // pred_fallthru
    _
  // Predicated region
  $region6: #{spatial_soft_argmax2d.1} parent=0 // pred_check
    _
  $region7: #{spatial_soft_argmax2d.1} parent=0 // pred_check_branch
    %12 = sbr.rel (0) target = $region9
  $region8: #{spatial_soft_argmax2d.1} parent=0 // pred_region
    _
  $region9: #{spatial_soft_argmax2d.1} parent=0 // pred_fallthru
    _
  // Predicated region
  $region10: #{spatial_soft_argmax2d.1} parent=0 // pred_check
    _
  $region11: #{spatial_soft_argmax2d.1} parent=0 // pred_check_branch
    %14 = sbr.rel (0) target = $region13
  $region12: #{spatial_soft_argmax2d.1} parent=0 // pred_region
    _
  $region13: #{spatial_soft_argmax2d.1} parent=0 // pred_fallthru
    _
  %s15 = sld [smem:[#allocation2]]
  %v16 = vld [vmem:[%s1] sm:$0xff]
  %v17 = vld [vmem:[%s1 + $0x8] sm:$0xff]
  %v18 = vstv %s15
  %v19 = vmul.f32 %v16, %v18
  %v20 = vmul.f32 %v17, %v18
  %v21 = vmax.f32 %v19, %v20
  %22 = vmax.xlane.f32.xlu0 %v21
  %v23 = vpop.xlane.xlu0 %22
  %v24 = vsub.f32 %v19, %v23
  %v25 = vsub.f32 %v20, %v23
  %v26 = vmul.f32 %v24, 1.442695
  %v27 = vpow.pop %v26
  %v28 = vmul.f32 %v25, 1.442695
  %v29 = vpow.pop %v28
  %v30 = vld [vmem:[%s2] sm:$0xff]
  %v31 = vld [vmem:[%s2 + $0x8] sm:$0xff]
  %v32 = vld [vmem:[%s2 + $0x10] sm:$0xff]
  %v33 = vld [vmem:[%s2 + $0x18] sm:$0xff]
  %v34 = vld [vmem:[%s2 + $0x20] sm:$0xff]
  %v35 = vld [vmem:[%s2 + $0x28] sm:$0xff]
  %v36 = vld [vmem:[%s2 + $0x30] sm:$0xff]
  %v37 = vld [vmem:[%s2 + $0x38] sm:$0xff]
  %v38 = vld [vmem:[%s2 + $0x40] sm:$0xff]
  %v39 = vld [vmem:[%s2 + $0x48] sm:$0xff]
  %v40 = vld [vmem:[%s2 + $0x50] sm:$0xff]
  %v41 = vld [vmem:[%s2 + $0x58] sm:$0xff]
  %v42 = vld [vmem:[%s2 + $0x60] sm:$0xff]
  %v43 = vld [vmem:[%s2 + $0x68] sm:$0xff]
  %v44 = vld [vmem:[%s2 + $0x70] sm:$0xff]
  %v45 = vld [vmem:[%s2 + $0x78] sm:$0xff]
  %v46 = vld [vmem:[%s2 + $0x80] sm:$0xff]
  %v47 = vld [vmem:[%s2 + $0x88] sm:$0xff]
  %v48 = vld [vmem:[%s2 + $0x90] sm:$0xff]
  %v49 = vld [vmem:[%s2 + $0x98] sm:$0xff]
  %v50 = vld [vmem:[%s2 + $0xa0] sm:$0xff]
  %v51 = vld [vmem:[%s2 + $0xa8] sm:$0xff]
  %v52 = vld [vmem:[%s2 + $0xb0] sm:$0xff]
  %v53 = vld [vmem:[%s2 + $0xb8] sm:$0xff]
  %v54 = vld [vmem:[%s2 + $0xc0] sm:$0xff]
  %v55 = vld [vmem:[%s2 + $0xc8] sm:$0xff]
  %v56 = vld [vmem:[%s2 + $0xd0] sm:$0xff]
  %v57 = vld [vmem:[%s2 + $0xd8] sm:$0xff]
  %v58 = vld [vmem:[%s2 + $0xe0] sm:$0xff]
  %v59 = vld [vmem:[%s2 + $0xe8] sm:$0xff]
  %v60 = vld [vmem:[%s2 + $0xf0] sm:$0xff]
  %v61 = vld [vmem:[%s2 + $0xf8] sm:$0xff]
  %62 = vmatprep.subr.mxu0 0.0
  %63 = vmatpush1.msra.mxu0 %v30
  %64 = vmatprep.subr.mxu0 0.0
  %65 = vmatpush1.msra.mxu0 %v31
  %66 = vmatprep.subr.mxu0 0.0
  %67 = vmatpush1.msra.mxu0 %v32
  %68 = vmatprep.subr.mxu0 0.0
  %69 = vmatpush1.msra.mxu0 %v33
  %70 = vmatprep.subr.mxu0 0.0
  %71 = vmatpush1.msra.mxu0 %v34
  %72 = vmatprep.subr.mxu0 0.0
  %73 = vmatpush1.msra.mxu0 %v35
  %74 = vmatprep.subr.mxu0 0.0
  %75 = vmatpush1.msra.mxu0 %v36
  %76 = vmatprep.subr.mxu0 0.0
  %77 = vmatpush1.msra.mxu0 %v37
  %78 = vmatprep.subr.mxu0 0.0
  %79 = vmatpush1.msra.mxu0 %v38
  %80 = vmatprep.subr.mxu0 0.0
  %81 = vmatpush1.msra.mxu0 %v39
  %82 = vmatprep.subr.mxu0 0.0
  %83 = vmatpush1.msra.mxu0 %v40
  %84 = vmatprep.subr.mxu0 0.0
  %85 = vmatpush1.msra.mxu0 %v41
  %86 = vmatprep.subr.mxu0 0.0
  %87 = vmatpush1.msra.mxu0 %v42
  %88 = vmatprep.subr.mxu0 0.0
  %89 = vmatpush1.msra.mxu0 %v43
  %90 = vmatprep.subr.mxu0 0.0
  %91 = vmatpush1.msra.mxu0 %v44
  %92 = vmatprep.subr.mxu0 0.0
  %93 = vmatpush1.msra.mxu0 %v45
  %94 = vmatprep.subr.mxu0 0.0
  %95 = vmatpush1.msra.mxu0 %v46
  %96 = vmatprep.subr.mxu0 0.0
  %97 = vmatpush1.msra.mxu0 %v47
  %98 = vmatprep.subr.mxu0 0.0
  %99 = vmatpush1.msra.mxu0 %v48
  %100 = vmatprep.subr.mxu0 0.0
  %101 = vmatpush1.msra.mxu0 %v49
  %102 = vmatprep.subr.mxu0 0.0
  %103 = vmatpush1.msra.mxu0 %v50
  %104 = vmatprep.subr.mxu0 0.0
  %105 = vmatpush1.msra.mxu0 %v51
  %106 = vmatprep.subr.mxu0 0.0
  %107 = vmatpush1.msra.mxu0 %v52
  %108 = vmatprep.subr.mxu0 0.0
  %109 = vmatpush1.msra.mxu0 %v53
  %110 = vmatprep.subr.mxu0 0.0
  %111 = vmatpush1.msra.mxu0 %v54
  %112 = vmatprep.subr.mxu0 0.0
  %113 = vmatpush1.msra.mxu0 %v55
  %114 = vmatprep.subr.mxu0 0.0
  %115 = vmatpush1.msra.mxu0 %v56
  %116 = vmatprep.subr.mxu0 0.0
  %117 = vmatpush1.msra.mxu0 %v57
  %118 = vmatprep.subr.mxu0 0.0
  %119 = vmatpush1.msra.mxu0 %v58
  %120 = vmatprep.subr.mxu0 0.0
  %121 = vmatpush1.msra.mxu0 %v59
  %122 = vmatprep.subr.mxu0 0.0
  %123 = vmatpush1.msra.mxu0 %v60
  %124 = vmatprep.subr.mxu0 0.0
  %125 = vmatpush1.msra.mxu0 %v61
  %126 = vmatprep.mubr.f32.mxu0 %v29
  %127 = vmatmul.mubr.f32.gmra.mrb[0].mxu0 %v27
  %v128 = vpop.f32.mrb[0].mxu0
  %v129 = vadd.f32 0.0, %v128
  %v130 = vpop.f32.mrb[0].mxu0
  %131 = vdwg.mxu0
  %v132 = vrcp.pop %v129
  %v133 = vmul.f32 %v129, %v132
  %v134 = vsub.f32 2.0, %v133
  %v135 = vmul.f32 %v132, %v134
  %137 = vset.pattern.permute.xlu0 2
  %138 = vperm.xlu0 %137, %v135
  %v139 = vpop.permute.xlu0 %138
  %v141 = vmul.f32 %v129, %v139
  %vm142 = vcmask 64512
  %143 = vst.msk [vmem:[%s3] sm:$0xff] %vm142, %v141
  // Predicated region
  $region14: #{spatial_soft_argmax2d.1} parent=0 // pred_check
    _
  $region15: #{spatial_soft_argmax2d.1} parent=0 // pred_check_branch
    %145 = sbr.rel (0) target = $region17
  $region16: #{spatial_soft_argmax2d.1} parent=0 // pred_region
    _
  $region17: #{spatial_soft_argmax2d.1} parent=0 // pred_fallthru
    _
  // Predicated region
  $region18: #{spatial_soft_argmax2d.1} parent=0 // pred_check
    _
  $region19: #{spatial_soft_argmax2d.1} parent=0 // pred_check_branch
    %147 = sbr.rel (0) target = $region21
  $region20: #{spatial_soft_argmax2d.1} parent=0 // pred_region
    _
  $region21: #{spatial_soft_argmax2d.1} parent=0 // pred_fallthru
    _

</llo_original>
